<compile_context>
chip_gen: v7x
topology: tpu7x:2x2x1
jax: 0.10.0
libtpu: 0.0.40
codegen_flags: <defaults>
</compile_context>

<pallas_src>
import functools

import jax
import jax.numpy as jnp
from jax.experimental import pallas as pl
from jax.experimental.pallas import tpu as pltpu

# ----------------------------- configuration --------------------------------
N            = 2           # batch
NUM_INPUTS   = 4           # num_inputs
NUM_CHANNELS = (8, 8)      # num_channels (n_out % n_in == 0: conv1 uses groups=n_in)
K            = 3           # kernel_size
L            = 16          # sequence length
LANES        = 128         # lane-dense padded time length (multiple of 128)


# ------------------------------- kernel --------------------------------------
def temporal_block_kernel(x_ref, w1d_ref, b1_ref, w2_ref, b2_ref, bd_ref,
                          o_ref, *, kernel_size, dilation, nc_out):
    """Fused TemporalBlock forward, all batches in one grid step.

    Packed layout: rows = batch*channels (sublanes), cols = time (lanes, padded
    to a multiple of 128; valid time steps are [0, L)).

    x_ref   : (N*C_in,        LANES)   layer input
    w1d_ref : (2*N*C_out, K*N*C_in)    rows [0, N*C_out): conv1 weights,
                                       tap-concatenated + batch-block-diagonal
                                       (group structure baked in as zeros);
                                       rows [N*C_out, 2*N*C_out): 1x1 downsample
                                       (or identity) acting on the unshifted tap.
    b1_ref  : (N*C_out, 1)             conv1 bias (tiled over batch)
    w2_ref  : (N*C_out, K*N*C_out)     conv2 weights, tap-concat + block-diag
    b2_ref  : (N*C_out, 1)             conv2 bias
    bd_ref  : (N*C_out, 1)             downsample bias (zeros if identity residual)
    o_ref   : (N*C_out, LANES)         block output
    """

    def shift_right(v, s):
        # Causal time shift: out[:, t] = v[:, t - s], zeros for t < s.
        # pltpu.roll follows jnp.roll semantics (positive shift -> higher lane
        # index); the first s lanes (wrap-around) are masked to zero so any
        # garbage living in the padded tail [L, LANES) never reaches a valid
        # time step.
        if s == 0:
            return v
        rolled = pltpu.roll(v, shift=s, axis=1)
        lane = jax.lax.broadcasted_iota(jnp.int32, v.shape, 1)
        return jnp.where(lane >= s, rolled, 0.0)

    x = x_ref[...]
    shifts = [(kernel_size - 1 - k) * dilation for k in range(kernel_size)]

    # ---- conv1 (grouped, dilated, causal) + 1x1 downsample: ONE matmul ------
    x_taps = jnp.concatenate([shift_right(x, s) for s in shifts], axis=0)
    fused = jnp.dot(w1d_ref[...], x_taps, preferred_element_type=jnp.float32)
    h1 = jnp.maximum(fused[:nc_out] + b1_ref[...], 0.0)   # chomp1 + relu1
    res = fused[nc_out:] + bd_ref[...]                    # downsample(x) / identity
    # dropout1 / dropout2: inference mode => identity.

    # ---- conv2 (dense, dilated, causal): tap-stack h1, ONE matmul -----------
    h_taps = jnp.concatenate([shift_right(h1, s) for s in shifts], axis=0)
    out2 = jnp.dot(w2_ref[...], h_taps, preferred_element_type=jnp.float32)
    out2 = jnp.maximum(out2 + b2_ref[...], 0.0)           # chomp2 + relu2

    # ---- final residual ReLU -------------------------------------------------
    o_ref[...] = jnp.maximum(out2 + res, 0.0)


def temporal_block_call(xp, w1d, b1p, w2c, b2p, bdp, *, kernel_size, dilation):
    nc_in, lanes = xp.shape
    nc_out = w2c.shape[0]
    kernel = functools.partial(temporal_block_kernel,
                               kernel_size=kernel_size, dilation=dilation,
                               nc_out=nc_out)
    grid_spec = pltpu.PrefetchScalarGridSpec(
        num_scalar_prefetch=0,
        grid=(1,),                        # batch folded into sublanes: 1 step
        in_specs=[
            pl.BlockSpec((nc_in, lanes), lambda i: (0, 0)),
            pl.BlockSpec(w1d.shape, lambda i: (0, 0)),
            pl.BlockSpec(b1p.shape, lambda i: (0, 0)),
            pl.BlockSpec(w2c.shape, lambda i: (0, 0)),
            pl.BlockSpec(b2p.shape, lambda i: (0, 0)),
            pl.BlockSpec(bdp.shape, lambda i: (0, 0)),
        ],
        out_specs=pl.BlockSpec((nc_out, lanes), lambda i: (0, 0)),
    )
    return pl.pallas_call(
        kernel,
        out_shape=jax.ShapeDtypeStruct((nc_out, lanes), jnp.float32),
        grid_spec=grid_spec,
        compiler_params=pltpu.CompilerParams(
            dimension_semantics=("arbitrary",)),
    )(xp, w1d, b1p, w2c, b2p, bdp)


# --------------------------- weight re-packing --------------------------------
def _block_diag(w, n):
    """(Co, Ci) -> (n*Co, n*Ci) batch-block-diagonal."""
    return jnp.kron(jnp.eye(n, dtype=w.dtype), w)


def pack_block_params(w1, b1, w2, b2, wd, bd, *, n_batch, c_in, c_out,
                      kernel_size):
    """Repack PyTorch-layout TemporalBlock weights into the tap-concatenated,
    batch-block-diagonal matrices the fused kernel consumes."""
    mult = c_out // c_in
    # conv1 group structure (groups = c_in): output channel o reads input o // mult
    gmask = (jnp.arange(c_out)[:, None] // mult
             == jnp.arange(c_in)[None, :]).astype(jnp.float32)      # (c_out, c_in)
    w1_sq = w1[:, 0, :]                                             # (c_out, K)
    w1_cat = jnp.concatenate(
        [_block_diag(w1_sq[:, k:k + 1] * gmask, n_batch)
         for k in range(kernel_size)], axis=1)                      # (N*Co, K*N*Ci)

    if wd is None:                       # identity residual (c_in == c_out)
        wd_eff = jnp.eye(c_out, dtype=jnp.float32)
        bd_eff = jnp.zeros((c_out,), jnp.float32)
    else:
        wd_eff, bd_eff = wd, bd
    wd_bd = _block_diag(wd_eff, n_batch)                            # (N*Co, N*Ci)
    # the downsample reads the unshifted input == the LAST tap block of x_taps
    wd_row = jnp.concatenate(
        [jnp.zeros((n_batch * c_out, (kernel_size - 1) * n_batch * c_in),
                   jnp.float32), wd_bd], axis=1)
    w1d = jnp.concatenate([w1_cat, wd_row], axis=0)                 # (2*N*Co, K*N*Ci)

    w2_cat = jnp.concatenate(
        [_block_diag(w2[:, :, k], n_batch) for k in range(kernel_size)],
        axis=1)                                                     # (N*Co, K*N*Co)

    b1p = jnp.tile(b1, n_batch)[:, None]
    b2p = jnp.tile(b2, n_batch)[:, None]
    bdp = jnp.tile(bd_eff, n_batch)[:, None]
    return w1d, b1p, w2_cat, b2p, bdp


# ------------------------------- TCN wrapper ----------------------------------
@functools.partial(jax.jit, static_argnames=("configs",))
def temporal_conv_net(x, params, configs):
    """x: (N, num_inputs, L) float32 -> (N, num_channels[-1], L) float32.

    params : per-layer tuples (w1, b1, w2, b2, wd, bd) in PyTorch layouts
             (wd/bd are None when c_in == c_out -> identity residual).
    configs: per-layer static tuples (c_in, c_out, kernel_size, dilation).
    """
    n_batch, c0, seq_len = x.shape
    lanes = ((seq_len + LANES - 1) // LANES) * LANES
    # Pack once to the lane-dense (N*C, lanes) layout (zero right-padding).
    xp = jnp.pad(x, ((0, 0), (0, 0), (0, lanes - seq_len)))
    xp = xp.reshape(n_batch * c0, lanes)

    for (w1, b1, w2, b2, wd, bd), (c_in, c_out, ks, dil) in zip(params, configs):
        w1d, b1p, w2c, b2p, bdp = pack_block_params(
            w1, b1, w2, b2, wd, bd,
            n_batch=n_batch, c_in=c_in, c_out=c_out, kernel_size=ks)
        xp = temporal_block_call(xp, w1d, b1p, w2c, b2p, bdp,
                                 kernel_size=ks, dilation=dil)

    c_last = configs[-1][1]
    return xp.reshape(n_batch, c_last, lanes)[:, :, :seq_len]


# --------------------------- pure-JAX reference --------------------------------
def ref_temporal_block(x, w1, b1, w2, b2, wd, bd, *, kernel_size, dilation):
    n, c_in, L_ = x.shape
    c_out = w1.shape[0]
    mult = c_out // c_in
    pad = (kernel_size - 1) * dilation
    xg = x[:, jnp.arange(c_out) // mult, :]
    xg = jnp.pad(xg, ((0, 0), (0, 0), (pad, 0)))
    h1 = sum(w1[:, 0, k][None, :, None] * xg[:, :, k * dilation:k * dilation + L_]
             for k in range(kernel_size))
    h1 = jax.nn.relu(h1 + b1[None, :, None])
    h1p = jnp.pad(h1, ((0, 0), (0, 0), (pad, 0)))
    out2 = sum(jnp.einsum('oc,ncl->nol', w2[:, :, k],
                          h1p[:, :, k * dilation:k * dilation + L_])
               for k in range(kernel_size))
    out2 = jax.nn.relu(out2 + b2[None, :, None])
    if wd is None:
        res = x
    else:
        res = jnp.einsum('oc,ncl->nol', wd, x) + bd[None, :, None]
    return jax.nn.relu(out2 + res)


def ref_temporal_conv_net(x, params, configs):
    out = x
    for (w1, b1, w2, b2, wd, bd), (_, _, ks, dil) in zip(params, configs):
        out = ref_temporal_block(out, w1, b1, w2, b2, wd, bd,
                                 kernel_size=ks, dilation=dil)
    return out


def weight_norm(v):
    """PyTorch weight_norm with default init (g = ||v|| over dims != 0): w == v,
    applied explicitly to keep the parameterization semantics."""
    norm = jnp.sqrt(jnp.sum(v * v, axis=tuple(range(1, v.ndim)), keepdims=True))
    return norm * v / norm


# ------------------------------- main -----------------------------------------
if __name__ == "__main__":
    key = jax.random.PRNGKey(0)
    keys = jax.random.split(key, 1 + 6 * len(NUM_CHANNELS))
    x = jax.random.normal(keys[0], (N, NUM_INPUTS, L), jnp.float32)

    params, configs = [], []
    kidx = 1
    c_in = NUM_INPUTS
    for i, c_out in enumerate(NUM_CHANNELS):
        dil = 2 ** i
        # conv1: weight_norm(Conv1d(c_in, c_out, K, groups=c_in, dilation=dil))
        v1 = 0.01 * jax.random.normal(keys[kidx], (c_out, 1, K), jnp.float32); kidx += 1
        b1 = 0.1 * jax.random.normal(keys[kidx], (c_out,), jnp.float32); kidx += 1
        # conv2: weight_norm(Conv1d(c_out, c_out, K, dilation=dil))
        v2 = 0.01 * jax.random.normal(keys[kidx], (c_out, c_out, K), jnp.float32); kidx += 1
        b2 = 0.1 * jax.random.normal(keys[kidx], (c_out,), jnp.float32); kidx += 1
        if c_in != c_out:   # downsample: Conv1d(c_in, c_out, 1)
            wd = 0.01 * jax.random.normal(keys[kidx], (c_out, c_in), jnp.float32); kidx += 1
            bd = 0.1 * jax.random.normal(keys[kidx], (c_out,), jnp.float32); kidx += 1
        else:
            wd, bd = None, None
            kidx += 2
        params.append((weight_norm(v1), b1, weight_norm(v2), b2, wd, bd))
        configs.append((c_in, c_out, K, dil))
        c_in = c_out

    params = tuple(params)
    configs = tuple(configs)

    out = temporal_conv_net(x, params, configs=configs)
    out = jax.block_until_ready(out)

    ref = ref_temporal_conv_net(x, params, configs)
    assert out.shape == (N, NUM_CHANNELS[-1], L)
    err = jnp.max(jnp.abs(out - ref))
    assert jnp.allclose(out, ref, atol=1e-4, rtol=1e-4), f"mismatch vs reference, max abs err={err}"

    # TODO(synk): nn.Dropout layers are inference-mode identities (no RNG mask).
    print("KERNEL_OK")
</pallas_src>

<mosaic_0001>
module attributes {stable_mosaic.version = 11 : i64} {
  func.func @temporal_block_kernel(%arg0: i32, %arg1: memref<8x128xf32, #tpu.memory_space<vmem>>, %arg2: memref<32x24xf32, #tpu.memory_space<vmem>>, %arg3: memref<16x1xf32, #tpu.memory_space<vmem>>, %arg4: memref<16x48xf32, #tpu.memory_space<vmem>>, %arg5: memref<16x1xf32, #tpu.memory_space<vmem>>, %arg6: memref<16x1xf32, #tpu.memory_space<vmem>>, %arg7: memref<16x128xf32, #tpu.memory_space<vmem>>) attributes {dimension_semantics = [#tpu.dimension_semantics<arbitrary>], iteration_bounds = array<i64: 1>, scalar_prefetch = 0 : i64, scratch_operands = 0 : i64, tpu.core_type = #tpu.core_type<tc>, window_params = [{pipeline_mode = #tpu.pipeline_mode<synchronous>, transform_indices = @transform_0, window_bounds = array<i64: 8, 128>}, {pipeline_mode = #tpu.pipeline_mode<synchronous>, transform_indices = @transform_1, window_bounds = array<i64: 32, 24>}, {pipeline_mode = #tpu.pipeline_mode<synchronous>, transform_indices = @transform_2, window_bounds = array<i64: 16, 1>}, {pipeline_mode = #tpu.pipeline_mode<synchronous>, transform_indices = @transform_3, window_bounds = array<i64: 16, 48>}, {pipeline_mode = #tpu.pipeline_mode<synchronous>, transform_indices = @transform_4, window_bounds = array<i64: 16, 1>}, {pipeline_mode = #tpu.pipeline_mode<synchronous>, transform_indices = @transform_5, window_bounds = array<i64: 16, 1>}, {pipeline_mode = #tpu.pipeline_mode<synchronous>, transform_indices = @transform_6, window_bounds = array<i64: 16, 128>}]} {
    %c0 = arith.constant 0 : index
    %c0_0 = arith.constant 0 : index
    %0 = vector.load %arg1[%c0, %c0_0] : memref<8x128xf32, #tpu.memory_space<vmem>>, vector<8x128xf32>
    %c2_i32 = arith.constant 2 : i32
    %1 = tpu.dynamic_rotate %0 by %c2_i32 dim 1 : vector<8x128xf32>, i32 -> vector<8x128xf32>
    %2 = tpu.iota {dimensions = array<i32: 1>} : vector<8x128xi32>
    %c2_i32_1 = arith.constant 2 : i32
    %3 = vector.broadcast %c2_i32_1 : i32 to vector<8x128xi32>
    %4 = arith.cmpi sge, %2, %3 : vector<8x128xi32>
    %cst = arith.constant 0.000000e+00 : f32
    %5 = vector.broadcast %cst : f32 to vector<8x128xf32>
    %6 = arith.select %4, %1, %5 : vector<8x128xi1>, vector<8x128xf32>
    %c1_i32 = arith.constant 1 : i32
    %7 = tpu.dynamic_rotate %0 by %c1_i32 dim 1 : vector<8x128xf32>, i32 -> vector<8x128xf32>
    %8 = tpu.iota {dimensions = array<i32: 1>} : vector<8x128xi32>
    %c1_i32_2 = arith.constant 1 : i32
    %9 = vector.broadcast %c1_i32_2 : i32 to vector<8x128xi32>
    %10 = arith.cmpi sge, %8, %9 : vector<8x128xi32>
    %cst_3 = arith.constant 0.000000e+00 : f32
    %11 = vector.broadcast %cst_3 : f32 to vector<8x128xf32>
    %12 = arith.select %10, %7, %11 : vector<8x128xi1>, vector<8x128xf32>
    %13 = tpu.concatenate %6, %12, %0 in 0 : vector<8x128xf32>, vector<8x128xf32>, vector<8x128xf32> -> vector<24x128xf32>
    %c0_4 = arith.constant 0 : index
    %c0_5 = arith.constant 0 : index
    %14 = vector.load %arg2[%c0_4, %c0_5] : memref<32x24xf32, #tpu.memory_space<vmem>>, vector<32x24xf32>
    %cst_6 = arith.constant dense<0.000000e+00> : vector<32x128xf32>
    %15 = tpu.matmul %14, %13, %cst_6 {dimension_numbers = #tpu.dot_dimension_numbers<[1], [0], [0], [1], [0, 0, 1, 1], [], []>} : vector<32x24xf32>, vector<24x128xf32>, vector<32x128xf32> -> vector<32x128xf32>
    %16 = vector.extract_strided_slice %15 {offsets = [0, 0], sizes = [16, 128], strides = [1, 1]} : vector<32x128xf32> to vector<16x128xf32>
    %c0_7 = arith.constant 0 : index
    %c0_8 = arith.constant 0 : index
    %17 = vector.load %arg3[%c0_7, %c0_8] : memref<16x1xf32, #tpu.memory_space<vmem>>, vector<16x1xf32>
    %18 = vector.broadcast %17 : vector<16x1xf32> to vector<16x128xf32>
    %19 = arith.addf %16, %18 : vector<16x128xf32>
    %cst_9 = arith.constant 0.000000e+00 : f32
    %20 = vector.broadcast %cst_9 : f32 to vector<16x128xf32>
    %21 = arith.maximumf %19, %20 : vector<16x128xf32>
    %22 = vector.extract_strided_slice %15 {offsets = [16, 0], sizes = [16, 128], strides = [1, 1]} : vector<32x128xf32> to vector<16x128xf32>
    %c0_10 = arith.constant 0 : index
    %c0_11 = arith.constant 0 : index
    %23 = vector.load %arg6[%c0_10, %c0_11] : memref<16x1xf32, #tpu.memory_space<vmem>>, vector<16x1xf32>
    %24 = vector.broadcast %23 : vector<16x1xf32> to vector<16x128xf32>
    %25 = arith.addf %22, %24 : vector<16x128xf32>
    %c2_i32_12 = arith.constant 2 : i32
    %26 = tpu.dynamic_rotate %21 by %c2_i32_12 dim 1 : vector<16x128xf32>, i32 -> vector<16x128xf32>
    %27 = tpu.iota {dimensions = array<i32: 1>} : vector<16x128xi32>
    %c2_i32_13 = arith.constant 2 : i32
    %28 = vector.broadcast %c2_i32_13 : i32 to vector<16x128xi32>
    %29 = arith.cmpi sge, %27, %28 : vector<16x128xi32>
    %cst_14 = arith.constant 0.000000e+00 : f32
    %30 = vector.broadcast %cst_14 : f32 to vector<16x128xf32>
    %31 = arith.select %29, %26, %30 : vector<16x128xi1>, vector<16x128xf32>
    %c1_i32_15 = arith.constant 1 : i32
    %32 = tpu.dynamic_rotate %21 by %c1_i32_15 dim 1 : vector<16x128xf32>, i32 -> vector<16x128xf32>
    %33 = tpu.iota {dimensions = array<i32: 1>} : vector<16x128xi32>
    %c1_i32_16 = arith.constant 1 : i32
    %34 = vector.broadcast %c1_i32_16 : i32 to vector<16x128xi32>
    %35 = arith.cmpi sge, %33, %34 : vector<16x128xi32>
    %cst_17 = arith.constant 0.000000e+00 : f32
    %36 = vector.broadcast %cst_17 : f32 to vector<16x128xf32>
    %37 = arith.select %35, %32, %36 : vector<16x128xi1>, vector<16x128xf32>
    %38 = tpu.concatenate %31, %37, %21 in 0 : vector<16x128xf32>, vector<16x128xf32>, vector<16x128xf32> -> vector<48x128xf32>
    %c0_18 = arith.constant 0 : index
    %c0_19 = arith.constant 0 : index
    %39 = vector.load %arg4[%c0_18, %c0_19] : memref<16x48xf32, #tpu.memory_space<vmem>>, vector<16x48xf32>
    %cst_20 = arith.constant dense<0.000000e+00> : vector<16x128xf32>
    %40 = tpu.matmul %39, %38, %cst_20 {dimension_numbers = #tpu.dot_dimension_numbers<[1], [0], [0], [1], [0, 0, 1, 1], [], []>} : vector<16x48xf32>, vector<48x128xf32>, vector<16x128xf32> -> vector<16x128xf32>
    %c0_21 = arith.constant 0 : index
    %c0_22 = arith.constant 0 : index
    %41 = vector.load %arg5[%c0_21, %c0_22] : memref<16x1xf32, #tpu.memory_space<vmem>>, vector<16x1xf32>
    %42 = vector.broadcast %41 : vector<16x1xf32> to vector<16x128xf32>
    %43 = arith.addf %40, %42 : vector<16x128xf32>
    %cst_23 = arith.constant 0.000000e+00 : f32
    %44 = vector.broadcast %cst_23 : f32 to vector<16x128xf32>
    %45 = arith.maximumf %43, %44 : vector<16x128xf32>
    %46 = arith.addf %45, %25 : vector<16x128xf32>
    %cst_24 = arith.constant 0.000000e+00 : f32
    %47 = vector.broadcast %cst_24 : f32 to vector<16x128xf32>
    %48 = arith.maximumf %46, %47 : vector<16x128xf32>
    %c0_25 = arith.constant 0 : index
    %c0_26 = arith.constant 0 : index
    %49 = vector.load %arg7[%c0_25, %c0_26] : memref<16x128xf32, #tpu.memory_space<vmem>>, vector<16x128xf32>
    tpu.vector_store %arg7[%c0_25, %c0_26], %48 {strides = array<i32>} : memref<16x128xf32, #tpu.memory_space<vmem>>, vector<16x128xf32>,
    return
  }
  func.func @transform_0(%arg0: i32) -> (i32, i32) {
    %c0_i32 = arith.constant 0 : i32
    %c0_i32_0 = arith.constant 0 : i32
    %c0_i32_1 = arith.constant 0 : i32
    return %c0_i32, %c0_i32_0 : i32, i32
  }
  func.func @transform_1(%arg0: i32) -> (i32, i32) {
    %c0_i32 = arith.constant 0 : i32
    %c0_i32_0 = arith.constant 0 : i32
    %c0_i32_1 = arith.constant 0 : i32
    return %c0_i32, %c0_i32_0 : i32, i32
  }
  func.func @transform_2(%arg0: i32) -> (i32, i32) {
    %c0_i32 = arith.constant 0 : i32
    %c0_i32_0 = arith.constant 0 : i32
    %c0_i32_1 = arith.constant 0 : i32
    return %c0_i32, %c0_i32_0 : i32, i32
  }
  func.func @transform_3(%arg0: i32) -> (i32, i32) {
    %c0_i32 = arith.constant 0 : i32
    %c0_i32_0 = arith.constant 0 : i32
    %c0_i32_1 = arith.constant 0 : i32
    return %c0_i32, %c0_i32_0 : i32, i32
  }
  func.func @transform_4(%arg0: i32) -> (i32, i32) {
    %c0_i32 = arith.constant 0 : i32
    %c0_i32_0 = arith.constant 0 : i32
    %c0_i32_1 = arith.constant 0 : i32
    return %c0_i32, %c0_i32_0 : i32, i32
  }
  func.func @transform_5(%arg0: i32) -> (i32, i32) {
    %c0_i32 = arith.constant 0 : i32
    %c0_i32_0 = arith.constant 0 : i32
    %c0_i32_1 = arith.constant 0 : i32
    return %c0_i32, %c0_i32_0 : i32, i32
  }
  func.func @transform_6(%arg0: i32) -> (i32, i32) {
    %c0_i32 = arith.constant 0 : i32
    %c0_i32_0 = arith.constant 0 : i32
    %c0_i32_1 = arith.constant 0 : i32
    return %c0_i32, %c0_i32_0 : i32, i32
  }
}

module attributes {stable_mosaic.version = 11 : i64} {
  func.func @temporal_block_kernel(%arg0: i32, %arg1: memref<16x128xf32, #tpu.memory_space<vmem>>, %arg2: memref<32x48xf32, #tpu.memory_space<vmem>>, %arg3: memref<16x1xf32, #tpu.memory_space<vmem>>, %arg4: memref<16x48xf32, #tpu.memory_space<vmem>>, %arg5: memref<16x1xf32, #tpu.memory_space<vmem>>, %arg6: memref<16x1xf32, #tpu.memory_space<vmem>>, %arg7: memref<16x128xf32, #tpu.memory_space<vmem>>) attributes {dimension_semantics = [#tpu.dimension_semantics<arbitrary>], iteration_bounds = array<i64: 1>, scalar_prefetch = 0 : i64, scratch_operands = 0 : i64, tpu.core_type = #tpu.core_type<tc>, window_params = [{pipeline_mode = #tpu.pipeline_mode<synchronous>, transform_indices = @transform_0, window_bounds = array<i64: 16, 128>}, {pipeline_mode = #tpu.pipeline_mode<synchronous>, transform_indices = @transform_1, window_bounds = array<i64: 32, 48>}, {pipeline_mode = #tpu.pipeline_mode<synchronous>, transform_indices = @transform_2, window_bounds = array<i64: 16, 1>}, {pipeline_mode = #tpu.pipeline_mode<synchronous>, transform_indices = @transform_3, window_bounds = array<i64: 16, 48>}, {pipeline_mode = #tpu.pipeline_mode<synchronous>, transform_indices = @transform_4, window_bounds = array<i64: 16, 1>}, {pipeline_mode = #tpu.pipeline_mode<synchronous>, transform_indices = @transform_5, window_bounds = array<i64: 16, 1>}, {pipeline_mode = #tpu.pipeline_mode<synchronous>, transform_indices = @transform_6, window_bounds = array<i64: 16, 128>}]} {
    %c0 = arith.constant 0 : index
    %c0_0 = arith.constant 0 : index
    %0 = vector.load %arg1[%c0, %c0_0] : memref<16x128xf32, #tpu.memory_space<vmem>>, vector<16x128xf32>
    %c4_i32 = arith.constant 4 : i32
    %1 = tpu.dynamic_rotate %0 by %c4_i32 dim 1 : vector<16x128xf32>, i32 -> vector<16x128xf32>
    %2 = tpu.iota {dimensions = array<i32: 1>} : vector<16x128xi32>
    %c4_i32_1 = arith.constant 4 : i32
    %3 = vector.broadcast %c4_i32_1 : i32 to vector<16x128xi32>
    %4 = arith.cmpi sge, %2, %3 : vector<16x128xi32>
    %cst = arith.constant 0.000000e+00 : f32
    %5 = vector.broadcast %cst : f32 to vector<16x128xf32>
    %6 = arith.select %4, %1, %5 : vector<16x128xi1>, vector<16x128xf32>
    %c2_i32 = arith.constant 2 : i32
    %7 = tpu.dynamic_rotate %0 by %c2_i32 dim 1 : vector<16x128xf32>, i32 -> vector<16x128xf32>
    %8 = tpu.iota {dimensions = array<i32: 1>} : vector<16x128xi32>
    %c2_i32_2 = arith.constant 2 : i32
    %9 = vector.broadcast %c2_i32_2 : i32 to vector<16x128xi32>
    %10 = arith.cmpi sge, %8, %9 : vector<16x128xi32>
    %cst_3 = arith.constant 0.000000e+00 : f32
    %11 = vector.broadcast %cst_3 : f32 to vector<16x128xf32>
    %12 = arith.select %10, %7, %11 : vector<16x128xi1>, vector<16x128xf32>
    %13 = tpu.concatenate %6, %12, %0 in 0 : vector<16x128xf32>, vector<16x128xf32>, vector<16x128xf32> -> vector<48x128xf32>
    %c0_4 = arith.constant 0 : index
    %c0_5 = arith.constant 0 : index
    %14 = vector.load %arg2[%c0_4, %c0_5] : memref<32x48xf32, #tpu.memory_space<vmem>>, vector<32x48xf32>
    %cst_6 = arith.constant dense<0.000000e+00> : vector<32x128xf32>
    %15 = tpu.matmul %14, %13, %cst_6 {dimension_numbers = #tpu.dot_dimension_numbers<[1], [0], [0], [1], [0, 0, 1, 1], [], []>} : vector<32x48xf32>, vector<48x128xf32>, vector<32x128xf32> -> vector<32x128xf32>
    %16 = vector.extract_strided_slice %15 {offsets = [0, 0], sizes = [16, 128], strides = [1, 1]} : vector<32x128xf32> to vector<16x128xf32>
    %c0_7 = arith.constant 0 : index
    %c0_8 = arith.constant 0 : index
    %17 = vector.load %arg3[%c0_7, %c0_8] : memref<16x1xf32, #tpu.memory_space<vmem>>, vector<16x1xf32>
    %18 = vector.broadcast %17 : vector<16x1xf32> to vector<16x128xf32>
    %19 = arith.addf %16, %18 : vector<16x128xf32>
    %cst_9 = arith.constant 0.000000e+00 : f32
    %20 = vector.broadcast %cst_9 : f32 to vector<16x128xf32>
    %21 = arith.maximumf %19, %20 : vector<16x128xf32>
    %22 = vector.extract_strided_slice %15 {offsets = [16, 0], sizes = [16, 128], strides = [1, 1]} : vector<32x128xf32> to vector<16x128xf32>
    %c0_10 = arith.constant 0 : index
    %c0_11 = arith.constant 0 : index
    %23 = vector.load %arg6[%c0_10, %c0_11] : memref<16x1xf32, #tpu.memory_space<vmem>>, vector<16x1xf32>
    %24 = vector.broadcast %23 : vector<16x1xf32> to vector<16x128xf32>
    %25 = arith.addf %22, %24 : vector<16x128xf32>
    %c4_i32_12 = arith.constant 4 : i32
    %26 = tpu.dynamic_rotate %21 by %c4_i32_12 dim 1 : vector<16x128xf32>, i32 -> vector<16x128xf32>
    %27 = tpu.iota {dimensions = array<i32: 1>} : vector<16x128xi32>
    %c4_i32_13 = arith.constant 4 : i32
    %28 = vector.broadcast %c4_i32_13 : i32 to vector<16x128xi32>
    %29 = arith.cmpi sge, %27, %28 : vector<16x128xi32>
    %cst_14 = arith.constant 0.000000e+00 : f32
    %30 = vector.broadcast %cst_14 : f32 to vector<16x128xf32>
    %31 = arith.select %29, %26, %30 : vector<16x128xi1>, vector<16x128xf32>
    %c2_i32_15 = arith.constant 2 : i32
    %32 = tpu.dynamic_rotate %21 by %c2_i32_15 dim 1 : vector<16x128xf32>, i32 -> vector<16x128xf32>
    %33 = tpu.iota {dimensions = array<i32: 1>} : vector<16x128xi32>
    %c2_i32_16 = arith.constant 2 : i32
    %34 = vector.broadcast %c2_i32_16 : i32 to vector<16x128xi32>
    %35 = arith.cmpi sge, %33, %34 : vector<16x128xi32>
    %cst_17 = arith.constant 0.000000e+00 : f32
    %36 = vector.broadcast %cst_17 : f32 to vector<16x128xf32>
    %37 = arith.select %35, %32, %36 : vector<16x128xi1>, vector<16x128xf32>
    %38 = tpu.concatenate %31, %37, %21 in 0 : vector<16x128xf32>, vector<16x128xf32>, vector<16x128xf32> -> vector<48x128xf32>
    %c0_18 = arith.constant 0 : index
    %c0_19 = arith.constant 0 : index
    %39 = vector.load %arg4[%c0_18, %c0_19] : memref<16x48xf32, #tpu.memory_space<vmem>>, vector<16x48xf32>
    %cst_20 = arith.constant dense<0.000000e+00> : vector<16x128xf32>
    %40 = tpu.matmul %39, %38, %cst_20 {dimension_numbers = #tpu.dot_dimension_numbers<[1], [0], [0], [1], [0, 0, 1, 1], [], []>} : vector<16x48xf32>, vector<48x128xf32>, vector<16x128xf32> -> vector<16x128xf32>
    %c0_21 = arith.constant 0 : index
    %c0_22 = arith.constant 0 : index
    %41 = vector.load %arg5[%c0_21, %c0_22] : memref<16x1xf32, #tpu.memory_space<vmem>>, vector<16x1xf32>
    %42 = vector.broadcast %41 : vector<16x1xf32> to vector<16x128xf32>
    %43 = arith.addf %40, %42 : vector<16x128xf32>
    %cst_23 = arith.constant 0.000000e+00 : f32
    %44 = vector.broadcast %cst_23 : f32 to vector<16x128xf32>
    %45 = arith.maximumf %43, %44 : vector<16x128xf32>
    %46 = arith.addf %45, %25 : vector<16x128xf32>
    %cst_24 = arith.constant 0.000000e+00 : f32
    %47 = vector.broadcast %cst_24 : f32 to vector<16x128xf32>
    %48 = arith.maximumf %46, %47 : vector<16x128xf32>
    %c0_25 = arith.constant 0 : index
    %c0_26 = arith.constant 0 : index
    %49 = vector.load %arg7[%c0_25, %c0_26] : memref<16x128xf32, #tpu.memory_space<vmem>>, vector<16x128xf32>
    tpu.vector_store %arg7[%c0_25, %c0_26], %48 {strides = array<i32>} : memref<16x128xf32, #tpu.memory_space<vmem>>, vector<16x128xf32>,
    return
  }
  func.func @transform_0(%arg0: i32) -> (i32, i32) {
    %c0_i32 = arith.constant 0 : i32
    %c0_i32_0 = arith.constant 0 : i32
    %c0_i32_1 = arith.constant 0 : i32
    return %c0_i32, %c0_i32_0 : i32, i32
  }
  func.func @transform_1(%arg0: i32) -> (i32, i32) {
    %c0_i32 = arith.constant 0 : i32
    %c0_i32_0 = arith.constant 0 : i32
    %c0_i32_1 = arith.constant 0 : i32
    return %c0_i32, %c0_i32_0 : i32, i32
  }
  func.func @transform_2(%arg0: i32) -> (i32, i32) {
    %c0_i32 = arith.constant 0 : i32
    %c0_i32_0 = arith.constant 0 : i32
    %c0_i32_1 = arith.constant 0 : i32
    return %c0_i32, %c0_i32_0 : i32, i32
  }
  func.func @transform_3(%arg0: i32) -> (i32, i32) {
    %c0_i32 = arith.constant 0 : i32
    %c0_i32_0 = arith.constant 0 : i32
    %c0_i32_1 = arith.constant 0 : i32
    return %c0_i32, %c0_i32_0 : i32, i32
  }
  func.func @transform_4(%arg0: i32) -> (i32, i32) {
    %c0_i32 = arith.constant 0 : i32
    %c0_i32_0 = arith.constant 0 : i32
    %c0_i32_1 = arith.constant 0 : i32
    return %c0_i32, %c0_i32_0 : i32, i32
  }
  func.func @transform_5(%arg0: i32) -> (i32, i32) {
    %c0_i32 = arith.constant 0 : i32
    %c0_i32_0 = arith.constant 0 : i32
    %c0_i32_1 = arith.constant 0 : i32
    return %c0_i32, %c0_i32_0 : i32, i32
  }
  func.func @transform_6(%arg0: i32) -> (i32, i32) {
    %c0_i32 = arith.constant 0 : i32
    %c0_i32_0 = arith.constant 0 : i32
    %c0_i32_1 = arith.constant 0 : i32
    return %c0_i32, %c0_i32_0 : i32, i32
  }
}

</mosaic_0001>

<llo_original>
// kernel: tile.28
$region0: #{tile.28}
  #allocation0 [shape = 's32[1]{0}', space=sflag, size = 0x4, scoped, tag = 'scoped memory for tile.28']
  %s0 = inlined_call_operand.vmem [shape: f32[8], index: 0, kind: input, shape index: {}]
  %s1 = inlined_call_operand.vmem [shape: f32[2,8], index: 1, kind: output, shape index: {}]
  // Predicated region
  $region2: #{tile.28} parent=0 // pred_check
    _
  $region3: #{tile.28} parent=0 // pred_check_branch
    %3 = sbr.rel (0) target = $region5
  $region4: #{tile.28} parent=0 // pred_region
    _
  $region5: #{tile.28} parent=0 // pred_fallthru
    _
  %v4 = vld [vmem:[%s0] ss:$0 sm:$0xff]
  %5 = vst [vmem:[%s1] sm:$0x3] %v4

// kernel: tile.0
$region0: #{tile.0}
  %s0 = inlined_call_operand.vmem [shape: f32[2,8], index: 0, kind: input, shape index: {}]
  %s1 = inlined_call_operand.vmem [shape: f32[16,1], index: 1, kind: output, shape index: {}]
  $region1: #{tile.0} parent=0
    #allocation0 [shape = 'u8[4096]{0}', space=vmem, size = 0x1000, scoped, tag = 'scoped mem for input reshape']
    %s3 = sshllo.u32 0, 2
    %v4 = vld [vmem:[%s0] sm:%s3]
    %5 = vst [vmem:[#allocation0] sm:%s3] %v4
    %v6 = vld [vmem:[#allocation0] sm:$0x3]
    %vm7 = vcmask 7168
    %8 = vst.msk [vmem:[%s1] ss:$8 sm:$0x3] %vm7, %v6
    %v9 = vld [vmem:[#allocation0] sm:$0x3]
    %10 = vrot.lane.b32.xlu0 %v9, 127
    %v11 = vpop.permute.xlu0 %10
    %vm12 = vcmask 7168
    %s13 = scalar_lea.vmem %s1, 1
    %14 = vst.msk [vmem:[%s13] ss:$8 sm:$0x3] %vm12, %v11
    %v15 = vld [vmem:[#allocation0] sm:$0x3]
    %16 = vrot.lane.b32.xlu0 %v15, 126
    %v17 = vpop.permute.xlu0 %16
    %vm18 = vcmask 7168
    %s19 = scalar_lea.vmem %s1, 2
    %20 = vst.msk [vmem:[%s19] ss:$8 sm:$0x3] %vm18, %v17
    %v21 = vld [vmem:[#allocation0] sm:$0x3]
    %22 = vrot.lane.b32.xlu0 %v21, 125
    %v23 = vpop.permute.xlu0 %22
    %vm24 = vcmask 7168
    %s25 = scalar_lea.vmem %s1, 3
    %26 = vst.msk [vmem:[%s25] ss:$8 sm:$0x3] %vm24, %v23
    %v27 = vld [vmem:[#allocation0] sm:$0x3]
    %28 = vrot.lane.b32.xlu0 %v27, 124
    %v29 = vpop.permute.xlu0 %28
    %vm30 = vcmask 7168
    %s31 = scalar_lea.vmem %s1, 4
    %32 = vst.msk [vmem:[%s31] ss:$8 sm:$0x3] %vm30, %v29
    %v33 = vld [vmem:[#allocation0] sm:$0x3]
    %34 = vrot.lane.b32.xlu0 %v33, 123
    %v35 = vpop.permute.xlu0 %34
    %vm36 = vcmask 7168
    %s37 = scalar_lea.vmem %s1, 5
    %38 = vst.msk [vmem:[%s37] ss:$8 sm:$0x3] %vm36, %v35
    %v39 = vld [vmem:[#allocation0] sm:$0x3]
    %40 = vrot.lane.b32.xlu0 %v39, 122
    %v41 = vpop.permute.xlu0 %40
    %vm42 = vcmask 7168
    %s43 = scalar_lea.vmem %s1, 6
    %44 = vst.msk [vmem:[%s43] ss:$8 sm:$0x3] %vm42, %v41
    %v45 = vld [vmem:[#allocation0] sm:$0x3]
    %46 = vrot.lane.b32.xlu0 %v45, 121
    %v47 = vpop.permute.xlu0 %46
    %vm48 = vcmask 7168
    %s49 = scalar_lea.vmem %s1, 7
    %50 = vst.msk [vmem:[%s49] ss:$8 sm:$0x3] %vm48, %v47

// kernel: temporal_conv_net.2
$region0: #{temporal_conv_net.2}
  #allocation0 [shape = 'u32[]', space=smem, size = 0x4, offset = 0x4, fixed_abs, tag = 'smem constant byte address 0x4 - core index']
  #allocation1 [shape = 'u32[144,128]{1,0:T(1,128)}', space=vmem, size = 0x12000, scoped, tag = 'internal scratch']
  %s0 = inlined_call_operand.vmem [shape: f32[8,128], index: 0, kind: input, shape index: {}]
  %s1 = inlined_call_operand.vmem [shape: f32[32,24], index: 1, kind: input, shape index: {}]
  %s2 = inlined_call_operand.vmem [shape: f32[16,1], index: 2, kind: input, shape index: {}]
  %s3 = inlined_call_operand.vmem [shape: f32[16,48], index: 3, kind: input, shape index: {}]
  %s4 = inlined_call_operand.vmem [shape: f32[16,1], index: 4, kind: input, shape index: {}]
  %s5 = inlined_call_operand.vmem [shape: f32[16,1], index: 5, kind: input, shape index: {}]
  %s6 = inlined_call_operand.vmem [shape: f32[16,128], index: 6, kind: output, shape index: {}]
  %s7 = sld [smem:[#allocation0]]
  $region34: #{temporal_conv_net.2} parent=0
    _
  %s9 = ssub.s32 1, %s7
  %s10 = scalar_select 0, %s9, %s7
  // Predicated region
  $region2: #{temporal_conv_net.2} parent=0 // pred_check
    _
  $region3: #{temporal_conv_net.2} parent=0 // pred_check_branch
    %12 = sbr.rel (0) target = $region5
  $region4: #{temporal_conv_net.2} parent=0 // pred_region
    _
  $region5: #{temporal_conv_net.2} parent=0 // pred_fallthru
    _
  // Predicated region
  $region6: #{temporal_conv_net.2} parent=0 // pred_check
    _
  $region7: #{temporal_conv_net.2} parent=0 // pred_check_branch
    %14 = sbr.rel (0) target = $region9
  $region8: #{temporal_conv_net.2} parent=0 // pred_region
    _
  $region9: #{temporal_conv_net.2} parent=0 // pred_fallthru
    _
  // Predicated region
  $region10: #{temporal_conv_net.2} parent=0 // pred_check
    _
  $region11: #{temporal_conv_net.2} parent=0 // pred_check_branch
    %16 = sbr.rel (0) target = $region13
  $region12: #{temporal_conv_net.2} parent=0 // pred_region
    _
  $region13: #{temporal_conv_net.2} parent=0 // pred_fallthru
    _
  // Predicated region
  $region14: #{temporal_conv_net.2} parent=0 // pred_check
    _
  $region15: #{temporal_conv_net.2} parent=0 // pred_check_branch
    %18 = sbr.rel (0) target = $region17
  $region16: #{temporal_conv_net.2} parent=0 // pred_region
    _
  $region17: #{temporal_conv_net.2} parent=0 // pred_fallthru
    _
  // Predicated region
  $region18: #{temporal_conv_net.2} parent=0 // pred_check
    _
  $region19: #{temporal_conv_net.2} parent=0 // pred_check_branch
    %20 = sbr.rel (0) target = $region21
  $region20: #{temporal_conv_net.2} parent=0 // pred_region
    _
  $region21: #{temporal_conv_net.2} parent=0 // pred_fallthru
    _
  // Predicated region
  $region22: #{temporal_conv_net.2} parent=0 // pred_check
    _
  $region23: #{temporal_conv_net.2} parent=0 // pred_check_branch
    %22 = sbr.rel (0) target = $region25
  $region24: #{temporal_conv_net.2} parent=0 // pred_region
    _
  $region25: #{temporal_conv_net.2} parent=0 // pred_fallthru
    _
  %v23 = vld [vmem:[%s0] sm:$0xff]
  %24 = vrot.lane.b32.xlu0 %v23, 2
  %v25 = vpop.permute.xlu0 %24
  %v26 = vlaneseq
  %v27 = vand.u32 %v26, 127
  %vm28 = vcmp.ge.s32.totalorder %v27, 2
  %v29 = vsel %vm28, %v25, 0.0
  %30 = vrot.lane.b32.xlu0 %v23, 1
  %v31 = vpop.permute.xlu0 %30
  %vm32 = vcmp.ge.s32.totalorder %v27, 1
  %v33 = vsel %vm32, %v31, 0.0
  %v34 = vld [vmem:[%s1] sm:$0xff]
  %v35 = vld [vmem:[%s1 + $0x8] sm:$0xff]
  %v36 = vld [vmem:[%s1 + $0x10] sm:$0xff]
  %v37 = vld [vmem:[%s1 + $0x18] sm:$0xff]
  %vm38 = vcmask 195584
  %v40 = vsel %vm38, %v34, 0
  %v43 = vsel %vm38, %v35, 0
  %v46 = vsel %vm38, %v36, 0
  %v49 = vsel %vm38, %v37, 0
  %51 = vmatprep.subr.mxu0 0.0
  %52 = vmatpush1.msra.mxu0 %v29
  %53 = vmatprep.subr.mxu0 0.0
  %54 = vmatpush1.msra.mxu0 %v33
  %55 = vmatprep.subr.mxu0 0.0
  %56 = vmatpush1.msra.mxu0 %v23
  %57 = vmatprep.subr.mxu0 0.0
  %58 = vmatpush1.msra.mxu0 0.0
  %59 = vmatprep.subr.mxu0 0.0
  %60 = vmatpush1.msra.mxu0 0.0
  %61 = vmatprep.subr.mxu0 0.0
  %62 = vmatpush1.msra.mxu0 0.0
  %63 = vmatprep.subr.mxu0 0.0
  %64 = vmatpush1.msra.mxu0 0.0
  %65 = vmatprep.subr.mxu0 0.0
  %66 = vmatpush1.msra.mxu0 0.0
  %67 = vmatprep.subr.mxu0 0.0
  %68 = vmatpush1.msra.mxu0 0.0
  %69 = vmatprep.subr.mxu0 0.0
  %70 = vmatpush1.msra.mxu0 0.0
  %71 = vmatprep.subr.mxu0 0.0
  %72 = vmatpush1.msra.mxu0 0.0
  %73 = vmatprep.subr.mxu0 0.0
  %74 = vmatpush1.msra.mxu0 0.0
  %75 = vmatprep.subr.mxu0 0.0
  %76 = vmatpush1.msra.mxu0 0.0
  %77 = vmatprep.subr.mxu0 0.0
  %78 = vmatpush1.msra.mxu0 0.0
  %79 = vmatprep.subr.mxu0 0.0
  %80 = vmatpush1.msra.mxu0 0.0
  %81 = vmatprep.subr.mxu0 0.0
  %82 = vmatpush1.msra.mxu0 0.0
  %83 = vmatprep.subr.mxu0 0.0
  %84 = vmatpush1.msra.mxu0 0.0
  %85 = vmatprep.subr.mxu0 0.0
  %86 = vmatpush1.msra.mxu0 0.0
  %87 = vmatprep.subr.mxu0 0.0
  %88 = vmatpush1.msra.mxu0 0.0
  %89 = vmatprep.subr.mxu0 0.0
  %90 = vmatpush1.msra.mxu0 0.0
  %91 = vmatprep.subr.mxu0 0.0
  %92 = vmatpush1.msra.mxu0 0.0
  %93 = vmatprep.subr.mxu0 0.0
  %94 = vmatpush1.msra.mxu0 0.0
  %95 = vmatprep.subr.mxu0 0.0
  %96 = vmatpush1.msra.mxu0 0.0
  %97 = vmatprep.subr.mxu0 0.0
  %98 = vmatpush1.msra.mxu0 0.0
  %99 = vmatprep.subr.mxu0 0.0
  %100 = vmatpush1.msra.mxu0 0.0
  %101 = vmatprep.subr.mxu0 0.0
  %102 = vmatpush1.msra.mxu0 0.0
  %103 = vmatprep.subr.mxu0 0.0
  %104 = vmatpush1.msra.mxu0 0.0
  %105 = vmatprep.subr.mxu0 0.0
  %106 = vmatpush1.msra.mxu0 0.0
  %107 = vmatprep.subr.mxu0 0.0
  %108 = vmatpush1.msra.mxu0 0.0
  %109 = vmatprep.subr.mxu0 0.0
  %110 = vmatpush1.msra.mxu0 0.0
  %111 = vmatprep.subr.mxu0 0.0
  %112 = vmatpush1.msra.mxu0 0.0
  %113 = vmatprep.subr.mxu0 0.0
  %114 = vmatpush1.msra.mxu0 0.0
  %115 = vmatprep.mubr.f32.mxu0 0.0
  %116 = vmatmul.mubr.f32.gmra.mrb[0].mxu0 %v40
  %v117 = vpop.f32.mrb[0].mxu0
  %v118 = vadd.f32 0.0, %v117
  %v119 = vpop.f32.mrb[0].mxu0
  %120 = vmatprep.mubr.f32.mxu0 0.0
  %121 = vmatmul.mubr.f32.gmra.mrb[0].mxu0 %v43
  %v122 = vpop.f32.mrb[0].mxu0
  %v123 = vadd.f32 0.0, %v122
  %v124 = vpop.f32.mrb[0].mxu0
  %125 = vmatprep.mubr.f32.mxu0 0.0
  %126 = vmatmul.mubr.f32.gmra.mrb[0].mxu0 %v46
  %v127 = vpop.f32.mrb[0].mxu0
  %v128 = vadd.f32 0.0, %v127
  %v129 = vpop.f32.mrb[0].mxu0
  %130 = vmatprep.mubr.f32.mxu0 0.0
  %131 = vmatmul.mubr.f32.gmra.mrb[0].mxu0 %v49
  %v132 = vpop.f32.mrb[0].mxu0
  %v133 = vadd.f32 0.0, %v132
  %v134 = vpop.f32.mrb[0].mxu0
  %135 = vdwg.mxu0
  %v136 = vld [vmem:[%s2] sm:$0xff]
  %v137 = vld [vmem:[%s2 + $0x8] sm:$0xff]
  %139 = vset.pattern.permute.xlu0 0
  %140 = vperm.xlu0 %139, %v136
  %v141 = vpop.permute.xlu0 %140
  %144 = vset.pattern.permute.xlu0 0
  %145 = vperm.xlu0 %144, %v137
  %v146 = vpop.permute.xlu0 %145
  %v148 = vadd.f32 %v118, %v141
  %v149 = vadd.f32 %v123, %v146
  %v150 = vmax.f32 %v148, 0.0
  %v151 = vmax.f32 %v149, 0.0
  %v152 = vld [vmem:[%s5] sm:$0xff]
  %v153 = vld [vmem:[%s5 + $0x8] sm:$0xff]
  %155 = vset.pattern.permute.xlu0 0
  %156 = vperm.xlu0 %155, %v152
  %v157 = vpop.permute.xlu0 %156
  %160 = vset.pattern.permute.xlu0 0
  %161 = vperm.xlu0 %160, %v153
  %v162 = vpop.permute.xlu0 %161
  %v164 = vadd.f32 %v128, %v157
  %v165 = vadd.f32 %v133, %v162
  %166 = vrot.lane.b32.xlu0 %v150, 2
  %v167 = vpop.permute.xlu0 %166
  %168 = vrot.lane.b32.xlu0 %v151, 2
  %v169 = vpop.permute.xlu0 %168
  %v170 = vsel %vm28, %v167, 0.0
  %v171 = vsel %vm28, %v169, 0.0
  %172 = vrot.lane.b32.xlu0 %v150, 1
  %v173 = vpop.permute.xlu0 %172
  %174 = vrot.lane.b32.xlu0 %v151, 1
  %v175 = vpop.permute.xlu0 %174
  %v176 = vsel %vm32, %v173, 0.0
  %v177 = vsel %vm32, %v175, 0.0
  %v178 = vld [vmem:[%s3] sm:$0xff]
  %v179 = vld [vmem:[%s3 + $0x8] sm:$0xff]
  %v180 = vld [vmem:[%s4] sm:$0xff]
  %v181 = vld [vmem:[%s4 + $0x8] sm:$0xff]
  %183 = vset.pattern.permute.xlu0 0
  %184 = vperm.xlu0 %183, %v180
  %v185 = vpop.permute.xlu0 %184
  %188 = vset.pattern.permute.xlu0 0
  %189 = vperm.xlu0 %188, %v181
  %v190 = vpop.permute.xlu0 %189
  %vm192 = vcmask 392192
  %v194 = vsel %vm192, %v178, 0
  %v197 = vsel %vm192, %v179, 0
  %199 = vmatprep.subr.mxu0 0.0
  %200 = vmatpush1.msra.mxu0 %v170
  %201 = vmatprep.subr.mxu0 0.0
  %202 = vmatpush1.msra.mxu0 %v171
  %203 = vmatprep.subr.mxu0 0.0
  %204 = vmatpush1.msra.mxu0 %v176
  %205 = vmatprep.subr.mxu0 0.0
  %206 = vmatpush1.msra.mxu0 %v177
  %207 = vmatprep.subr.mxu0 0.0
  %208 = vmatpush1.msra.mxu0 %v150
  %209 = vmatprep.subr.mxu0 0.0
  %210 = vmatpush1.msra.mxu0 %v151
  %211 = vmatprep.subr.mxu0 0.0
  %212 = vmatpush1.msra.mxu0 0.0
  %213 = vmatprep.subr.mxu0 0.0
  %214 = vmatpush1.msra.mxu0 0.0
  %215 = vmatprep.subr.mxu0 0.0
  %216 = vmatpush1.msra.mxu0 0.0
  %217 = vmatprep.subr.mxu0 0.0
  %218 = vmatpush1.msra.mxu0 0.0
  %219 = vmatprep.subr.mxu0 0.0
  %220 = vmatpush1.msra.mxu0 0.0
  %221 = vmatprep.subr.mxu0 0.0
  %222 = vmatpush1.msra.mxu0 0.0
  %223 = vmatprep.subr.mxu0 0.0
  %224 = vmatpush1.msra.mxu0 0.0
  %225 = vmatprep.subr.mxu0 0.0
  %226 = vmatpush1.msra.mxu0 0.0
  %227 = vmatprep.subr.mxu0 0.0
  %228 = vmatpush1.msra.mxu0 0.0
  %229 = vmatprep.subr.mxu0 0.0
  %230 = vmatpush1.msra.mxu0 0.0
  %231 = vmatprep.subr.mxu0 0.0
  %232 = vmatpush1.msra.mxu0 0.0
  %233 = vmatprep.subr.mxu0 0.0
  %234 = vmatpush1.msra.mxu0 0.0
  %235 = vmatprep.subr.mxu0 0.0
  %236 = vmatpush1.msra.mxu0 0.0
  %237 = vmatprep.subr.mxu0 0.0
  %238 = vmatpush1.msra.mxu0 0.0
  %239 = vmatprep.subr.mxu0 0.0
  %240 = vmatpush1.msra.mxu0 0.0
  %241 = vmatprep.subr.mxu0 0.0
  %242 = vmatpush1.msra.mxu0 0.0
  %243 = vmatprep.subr.mxu0 0.0
  %244 = vmatpush1.msra.mxu0 0.0
  %245 = vmatprep.subr.mxu0 0.0
  %246 = vmatpush1.msra.mxu0 0.0
  %247 = vmatprep.subr.mxu0 0.0
  %248 = vmatpush1.msra.mxu0 0.0
  %249 = vmatprep.subr.mxu0 0.0
  %250 = vmatpush1.msra.mxu0 0.0
  %251 = vmatprep.subr.mxu0 0.0
  %252 = vmatpush1.msra.mxu0 0.0
  %253 = vmatprep.subr.mxu0 0.0
  %254 = vmatpush1.msra.mxu0 0.0
  %255 = vmatprep.subr.mxu0 0.0
  %256 = vmatpush1.msra.mxu0 0.0
  %257 = vmatprep.subr.mxu0 0.0
  %258 = vmatpush1.msra.mxu0 0.0
  %259 = vmatprep.subr.mxu0 0.0
  %260 = vmatpush1.msra.mxu0 0.0
  %261 = vmatprep.subr.mxu0 0.0
  %262 = vmatpush1.msra.mxu0 0.0
  %263 = vmatprep.mubr.f32.mxu0 0.0
  %264 = vmatmul.mubr.f32.gmra.mrb[0].mxu0 %v194
  %v265 = vpop.f32.mrb[0].mxu0
  %v266 = vadd.f32 %v185, %v265
  %v267 = vpop.f32.mrb[0].mxu0
  %268 = vmatprep.mubr.f32.mxu0 0.0
  %269 = vmatmul.mubr.f32.gmra.mrb[0].mxu0 %v197
  %v270 = vpop.f32.mrb[0].mxu0
  %v271 = vadd.f32 %v190, %v270
  %v272 = vpop.f32.mrb[0].mxu0
  %273 = vdwg.mxu0
  %v274 = vmax.f32 %v266, 0.0
  %v275 = vmax.f32 %v271, 0.0
  %v276 = vadd.f32 %v274, %v164
  %v277 = vadd.f32 %v275, %v165
  %v278 = vmax.f32 %v276, 0.0
  %v279 = vmax.f32 %v277, 0.0
  %280 = vst [vmem:[%s6] sm:$0xff] %v278
  %281 = vst [vmem:[%s6 + $0x8] sm:$0xff] %v279
  // Predicated region
  $region26: #{temporal_conv_net.2} parent=0 // pred_check
    _
  $region27: #{temporal_conv_net.2} parent=0 // pred_check_branch
    %283 = sbr.rel (0) target = $region29
  $region28: #{temporal_conv_net.2} parent=0 // pred_region
    _
  $region29: #{temporal_conv_net.2} parent=0 // pred_fallthru
    _
  // Predicated region
  $region30: #{temporal_conv_net.2} parent=0 // pred_check
    _
  $region31: #{temporal_conv_net.2} parent=0 // pred_check_branch
    %285 = sbr.rel (0) target = $region33
  $region32: #{temporal_conv_net.2} parent=0 // pred_region
    _
  $region33: #{temporal_conv_net.2} parent=0 // pred_fallthru
    _

// kernel: temporal_conv_net.3
$region0: #{temporal_conv_net.3}
  #allocation0 [shape = 'u32[]', space=smem, size = 0x4, offset = 0x4, fixed_abs, tag = 'smem constant byte address 0x4 - core index']
  #allocation1 [shape = 'u32[144,128]{1,0:T(1,128)}', space=vmem, size = 0x12000, scoped, tag = 'internal scratch']
  %s0 = inlined_call_operand.vmem [shape: f32[16,128], index: 0, kind: input, shape index: {}]
  %s1 = inlined_call_operand.vmem [shape: f32[32,48], index: 1, kind: input, shape index: {}]
  %s2 = inlined_call_operand.vmem [shape: f32[16,1], index: 2, kind: input, shape index: {}]
  %s3 = inlined_call_operand.vmem [shape: f32[16,48], index: 3, kind: input, shape index: {}]
  %s4 = inlined_call_operand.vmem [shape: f32[16,1], index: 4, kind: input, shape index: {}]
  %s5 = inlined_call_operand.vmem [shape: f32[16,1], index: 5, kind: input, shape index: {}]
  %s6 = inlined_call_operand.hbm [shape: f32[16,128], index: 6, kind: output, shape index: {}]
  %s7 = sld [smem:[#allocation0]]
  $region34: #{temporal_conv_net.3} parent=0
    _
  %s9 = ssub.s32 1, %s7
  %s10 = scalar_select 0, %s9, %s7
  $region1: #{temporal_conv_net.3} parent=0
    #allocation2 [shape = 'u8[8192]{0}', space=vmem, size = 0x2000, scoped, tag = 'output window, operand 0, single buffered']
    #allocation3 [shape = 's32[1]{0}', space=sflag, size = 0x4, scoped, tag = 'scoped memory for temporal_conv_net.3']
    %11 = vsyncpa [#allocation3], 0
    // Predicated region
    $region2: #{temporal_conv_net.3} parent=1 // pred_check
      _
    $region3: #{temporal_conv_net.3} parent=1 // pred_check_branch
      %13 = sbr.rel (0) target = $region5
    $region4: #{temporal_conv_net.3} parent=1 // pred_region
      _
    $region5: #{temporal_conv_net.3} parent=1 // pred_fallthru
      _
    // Predicated region
    $region6: #{temporal_conv_net.3} parent=1 // pred_check
      _
    $region7: #{temporal_conv_net.3} parent=1 // pred_check_branch
      %15 = sbr.rel (0) target = $region9
    $region8: #{temporal_conv_net.3} parent=1 // pred_region
      _
    $region9: #{temporal_conv_net.3} parent=1 // pred_fallthru
      _
    // Predicated region
    $region10: #{temporal_conv_net.3} parent=1 // pred_check
      _
    $region11: #{temporal_conv_net.3} parent=1 // pred_check_branch
      %17 = sbr.rel (0) target = $region13
    $region12: #{temporal_conv_net.3} parent=1 // pred_region
      _
    $region13: #{temporal_conv_net.3} parent=1 // pred_fallthru
      _
    // Predicated region
    $region14: #{temporal_conv_net.3} parent=1 // pred_check
      _
    $region15: #{temporal_conv_net.3} parent=1 // pred_check_branch
      %19 = sbr.rel (0) target = $region17
    $region16: #{temporal_conv_net.3} parent=1 // pred_region
      _
    $region17: #{temporal_conv_net.3} parent=1 // pred_fallthru
      _
    // Predicated region
    $region18: #{temporal_conv_net.3} parent=1 // pred_check
      _
    $region19: #{temporal_conv_net.3} parent=1 // pred_check_branch
      %21 = sbr.rel (0) target = $region21
    $region20: #{temporal_conv_net.3} parent=1 // pred_region
      _
    $region21: #{temporal_conv_net.3} parent=1 // pred_fallthru
      _
    // Predicated region
    $region22: #{temporal_conv_net.3} parent=1 // pred_check
      _
    $region23: #{temporal_conv_net.3} parent=1 // pred_check_branch
      %23 = sbr.rel (0) target = $region25
    $region24: #{temporal_conv_net.3} parent=1 // pred_region
      _
    $region25: #{temporal_conv_net.3} parent=1 // pred_fallthru
      _
    %v24 = vld [vmem:[%s0] sm:$0xff]
    %v25 = vld [vmem:[%s0 + $0x8] sm:$0xff]
    %26 = vrot.lane.b32.xlu0 %v24, 4
    %v27 = vpop.permute.xlu0 %26
    %28 = vrot.lane.b32.xlu0 %v25, 4
    %v29 = vpop.permute.xlu0 %28
    %v30 = vlaneseq
    %v31 = vand.u32 %v30, 127
    %vm32 = vcmp.ge.s32.totalorder %v31, 4
    %v33 = vsel %vm32, %v27, 0.0
    %v34 = vsel %vm32, %v29, 0.0
    %35 = vrot.lane.b32.xlu0 %v24, 2
    %v36 = vpop.permute.xlu0 %35
    %37 = vrot.lane.b32.xlu0 %v25, 2
    %v38 = vpop.permute.xlu0 %37
    %vm39 = vcmp.ge.s32.totalorder %v31, 2
    %v40 = vsel %vm39, %v36, 0.0
    %v41 = vsel %vm39, %v38, 0.0
    %v42 = vld [vmem:[%s1] sm:$0xff]
    %v43 = vld [vmem:[%s1 + $0x8] sm:$0xff]
    %v44 = vld [vmem:[%s1 + $0x10] sm:$0xff]
    %v45 = vld [vmem:[%s1 + $0x18] sm:$0xff]
    %vm46 = vcmask 392192
    %v48 = vsel %vm46, %v42, 0
    %v51 = vsel %vm46, %v43, 0
    %v54 = vsel %vm46, %v44, 0
    %v57 = vsel %vm46, %v45, 0
    %59 = vmatprep.subr.mxu0 0.0
    %60 = vmatpush1.msra.mxu0 %v33
    %61 = vmatprep.subr.mxu0 0.0
    %62 = vmatpush1.msra.mxu0 %v34
    %63 = vmatprep.subr.mxu0 0.0
    %64 = vmatpush1.msra.mxu0 %v40
    %65 = vmatprep.subr.mxu0 0.0
    %66 = vmatpush1.msra.mxu0 %v41
    %67 = vmatprep.subr.mxu0 0.0
    %68 = vmatpush1.msra.mxu0 %v24
    %69 = vmatprep.subr.mxu0 0.0
    %70 = vmatpush1.msra.mxu0 %v25
    %71 = vmatprep.subr.mxu0 0.0
    %72 = vmatpush1.msra.mxu0 0.0
    %73 = vmatprep.subr.mxu0 0.0
    %74 = vmatpush1.msra.mxu0 0.0
    %75 = vmatprep.subr.mxu0 0.0
    %76 = vmatpush1.msra.mxu0 0.0
    %77 = vmatprep.subr.mxu0 0.0
    %78 = vmatpush1.msra.mxu0 0.0
    %79 = vmatprep.subr.mxu0 0.0
    %80 = vmatpush1.msra.mxu0 0.0
    %81 = vmatprep.subr.mxu0 0.0
    %82 = vmatpush1.msra.mxu0 0.0
    %83 = vmatprep.subr.mxu0 0.0
    %84 = vmatpush1.msra.mxu0 0.0
    %85 = vmatprep.subr.mxu0 0.0
    %86 = vmatpush1.msra.mxu0 0.0
    %87 = vmatprep.subr.mxu0 0.0
    %88 = vmatpush1.msra.mxu0 0.0
    %89 = vmatprep.subr.mxu0 0.0
    %90 = vmatpush1.msra.mxu0 0.0
    %91 = vmatprep.subr.mxu0 0.0
    %92 = vmatpush1.msra.mxu0 0.0
    %93 = vmatprep.subr.mxu0 0.0
    %94 = vmatpush1.msra.mxu0 0.0
    %95 = vmatprep.subr.mxu0 0.0
    %96 = vmatpush1.msra.mxu0 0.0
    %97 = vmatprep.subr.mxu0 0.0
    %98 = vmatpush1.msra.mxu0 0.0
    %99 = vmatprep.subr.mxu0 0.0
    %100 = vmatpush1.msra.mxu0 0.0
    %101 = vmatprep.subr.mxu0 0.0
    %102 = vmatpush1.msra.mxu0 0.0
    %103 = vmatprep.subr.mxu0 0.0
    %104 = vmatpush1.msra.mxu0 0.0
    %105 = vmatprep.subr.mxu0 0.0
    %106 = vmatpush1.msra.mxu0 0.0
    %107 = vmatprep.subr.mxu0 0.0
    %108 = vmatpush1.msra.mxu0 0.0
    %109 = vmatprep.subr.mxu0 0.0
    %110 = vmatpush1.msra.mxu0 0.0
    %111 = vmatprep.subr.mxu0 0.0
    %112 = vmatpush1.msra.mxu0 0.0
    %113 = vmatprep.subr.mxu0 0.0
    %114 = vmatpush1.msra.mxu0 0.0
    %115 = vmatprep.subr.mxu0 0.0
    %116 = vmatpush1.msra.mxu0 0.0
    %117 = vmatprep.subr.mxu0 0.0
    %118 = vmatpush1.msra.mxu0 0.0
    %119 = vmatprep.subr.mxu0 0.0
    %120 = vmatpush1.msra.mxu0 0.0
    %121 = vmatprep.subr.mxu0 0.0
    %122 = vmatpush1.msra.mxu0 0.0
    %123 = vmatprep.mubr.f32.mxu0 0.0
    %124 = vmatmul.mubr.f32.gmra.mrb[0].mxu0 %v48
    %v125 = vpop.f32.mrb[0].mxu0
    %v126 = vadd.f32 0.0, %v125
    %v127 = vpop.f32.mrb[0].mxu0
    %128 = vmatprep.mubr.f32.mxu0 0.0
    %129 = vmatmul.mubr.f32.gmra.mrb[0].mxu0 %v51
    %v130 = vpop.f32.mrb[0].mxu0
    %v131 = vadd.f32 0.0, %v130
    %v132 = vpop.f32.mrb[0].mxu0
    %133 = vmatprep.mubr.f32.mxu0 0.0
    %134 = vmatmul.mubr.f32.gmra.mrb[0].mxu0 %v54
    %v135 = vpop.f32.mrb[0].mxu0
    %v136 = vadd.f32 0.0, %v135
    %v137 = vpop.f32.mrb[0].mxu0
    %138 = vmatprep.mubr.f32.mxu0 0.0
    %139 = vmatmul.mubr.f32.gmra.mrb[0].mxu0 %v57
    %v140 = vpop.f32.mrb[0].mxu0
    %v141 = vadd.f32 0.0, %v140
    %v142 = vpop.f32.mrb[0].mxu0
    %143 = vdwg.mxu0
    %v144 = vld [vmem:[%s2] sm:$0xff]
    %v145 = vld [vmem:[%s2 + $0x8] sm:$0xff]
    %147 = vset.pattern.permute.xlu0 0
    %148 = vperm.xlu0 %147, %v144
    %v149 = vpop.permute.xlu0 %148
    %152 = vset.pattern.permute.xlu0 0
    %153 = vperm.xlu0 %152, %v145
    %v154 = vpop.permute.xlu0 %153
    %v156 = vadd.f32 %v126, %v149
    %v157 = vadd.f32 %v131, %v154
    %v158 = vmax.f32 %v156, 0.0
    %v159 = vmax.f32 %v157, 0.0
    %v160 = vld [vmem:[%s5] sm:$0xff]
    %v161 = vld [vmem:[%s5 + $0x8] sm:$0xff]
    %163 = vset.pattern.permute.xlu0 0
    %164 = vperm.xlu0 %163, %v160
    %v165 = vpop.permute.xlu0 %164
    %168 = vset.pattern.permute.xlu0 0
    %169 = vperm.xlu0 %168, %v161
    %v170 = vpop.permute.xlu0 %169
    %v172 = vadd.f32 %v136, %v165
    %v173 = vadd.f32 %v141, %v170
    %174 = vrot.lane.b32.xlu0 %v158, 4
    %v175 = vpop.permute.xlu0 %174
    %176 = vrot.lane.b32.xlu0 %v159, 4
    %v177 = vpop.permute.xlu0 %176
    %v178 = vsel %vm32, %v175, 0.0
    %v179 = vsel %vm32, %v177, 0.0
    %180 = vrot.lane.b32.xlu0 %v158, 2
    %v181 = vpop.permute.xlu0 %180
    %182 = vrot.lane.b32.xlu0 %v159, 2
    %v183 = vpop.permute.xlu0 %182
    %v184 = vsel %vm39, %v181, 0.0
    %v185 = vsel %vm39, %v183, 0.0
    %v186 = vld [vmem:[%s3] sm:$0xff]
    %v187 = vld [vmem:[%s3 + $0x8] sm:$0xff]
    %v188 = vld [vmem:[%s4] sm:$0xff]
    %v189 = vld [vmem:[%s4 + $0x8] sm:$0xff]
    %191 = vset.pattern.permute.xlu0 0
    %192 = vperm.xlu0 %191, %v188
    %v193 = vpop.permute.xlu0 %192
    %196 = vset.pattern.permute.xlu0 0
    %197 = vperm.xlu0 %196, %v189
    %v198 = vpop.permute.xlu0 %197
    %v201 = vsel %vm46, %v186, 0
    %v204 = vsel %vm46, %v187, 0
    %206 = vmatprep.subr.mxu0 0.0
    %207 = vmatpush1.msra.mxu0 %v178
    %208 = vmatprep.subr.mxu0 0.0
    %209 = vmatpush1.msra.mxu0 %v179
    %210 = vmatprep.subr.mxu0 0.0
    %211 = vmatpush1.msra.mxu0 %v184
    %212 = vmatprep.subr.mxu0 0.0
    %213 = vmatpush1.msra.mxu0 %v185
    %214 = vmatprep.subr.mxu0 0.0
    %215 = vmatpush1.msra.mxu0 %v158
    %216 = vmatprep.subr.mxu0 0.0
    %217 = vmatpush1.msra.mxu0 %v159
    %218 = vmatprep.subr.mxu0 0.0
    %219 = vmatpush1.msra.mxu0 0.0
    %220 = vmatprep.subr.mxu0 0.0
    %221 = vmatpush1.msra.mxu0 0.0
    %222 = vmatprep.subr.mxu0 0.0
    %223 = vmatpush1.msra.mxu0 0.0
    %224 = vmatprep.subr.mxu0 0.0
    %225 = vmatpush1.msra.mxu0 0.0
    %226 = vmatprep.subr.mxu0 0.0
    %227 = vmatpush1.msra.mxu0 0.0
    %228 = vmatprep.subr.mxu0 0.0
    %229 = vmatpush1.msra.mxu0 0.0
    %230 = vmatprep.subr.mxu0 0.0
    %231 = vmatpush1.msra.mxu0 0.0
    %232 = vmatprep.subr.mxu0 0.0
    %233 = vmatpush1.msra.mxu0 0.0
    %234 = vmatprep.subr.mxu0 0.0
    %235 = vmatpush1.msra.mxu0 0.0
    %236 = vmatprep.subr.mxu0 0.0
    %237 = vmatpush1.msra.mxu0 0.0
    %238 = vmatprep.subr.mxu0 0.0
    %239 = vmatpush1.msra.mxu0 0.0
    %240 = vmatprep.subr.mxu0 0.0
    %241 = vmatpush1.msra.mxu0 0.0
    %242 = vmatprep.subr.mxu0 0.0
    %243 = vmatpush1.msra.mxu0 0.0
    %244 = vmatprep.subr.mxu0 0.0
    %245 = vmatpush1.msra.mxu0 0.0
    %246 = vmatprep.subr.mxu0 0.0
    %247 = vmatpush1.msra.mxu0 0.0
    %248 = vmatprep.subr.mxu0 0.0
    %249 = vmatpush1.msra.mxu0 0.0
    %250 = vmatprep.subr.mxu0 0.0
    %251 = vmatpush1.msra.mxu0 0.0
    %252 = vmatprep.subr.mxu0 0.0
    %253 = vmatpush1.msra.mxu0 0.0
    %254 = vmatprep.subr.mxu0 0.0
    %255 = vmatpush1.msra.mxu0 0.0
    %256 = vmatprep.subr.mxu0 0.0
    %257 = vmatpush1.msra.mxu0 0.0
    %258 = vmatprep.subr.mxu0 0.0
    %259 = vmatpush1.msra.mxu0 0.0
    %260 = vmatprep.subr.mxu0 0.0
    %261 = vmatpush1.msra.mxu0 0.0
    %262 = vmatprep.subr.mxu0 0.0
    %263 = vmatpush1.msra.mxu0 0.0
    %264 = vmatprep.subr.mxu0 0.0
    %265 = vmatpush1.msra.mxu0 0.0
    %266 = vmatprep.subr.mxu0 0.0
    %267 = vmatpush1.msra.mxu0 0.0
    %268 = vmatprep.subr.mxu0 0.0
    %269 = vmatpush1.msra.mxu0 0.0
    %270 = vmatprep.mubr.f32.mxu0 0.0
    %271 = vmatmul.mubr.f32.gmra.mrb[0].mxu0 %v201
    %v272 = vpop.f32.mrb[0].mxu0
    %v273 = vadd.f32 %v193, %v272
    %v274 = vpop.f32.mrb[0].mxu0
    %275 = vmatprep.mubr.f32.mxu0 0.0
    %276 = vmatmul.mubr.f32.gmra.mrb[0].mxu0 %v204
    %v277 = vpop.f32.mrb[0].mxu0
    %v278 = vadd.f32 %v198, %v277
    %v279 = vpop.f32.mrb[0].mxu0
    %280 = vdwg.mxu0
    %v281 = vmax.f32 %v273, 0.0
    %v282 = vmax.f32 %v278, 0.0
    %v283 = vadd.f32 %v281, %v172
    %v284 = vadd.f32 %v282, %v173
    %v285 = vmax.f32 %v283, 0.0
    %v286 = vmax.f32 %v284, 0.0
    %287 = vst [vmem:[#allocation2] sm:$0xff] %v285
    %288 = vst [vmem:[#allocation2 + $0x8] sm:$0xff] %v286
    // Predicated region
    $region26: #{temporal_conv_net.3} parent=1 // pred_check
      _
    $region27: #{temporal_conv_net.3} parent=1 // pred_check_branch
      %290 = sbr.rel (0) target = $region29
    $region28: #{temporal_conv_net.3} parent=1 // pred_region
      %s292 = ssub.s32 256, 256
      %293 = vsyncadd [#allocation3], %s292
      %s294 = sshll.u32 [#allocation2], 4
      %s295 = int_to_ptr.vmem [resolvable:$true] %s294
      %300 = dma.vmem_to_hbm [thread:$0]  %s295, 256, %s6, [#allocation3], 128, 128, 8
    $region29: #{temporal_conv_net.3} parent=1 // pred_fallthru
      _
    // Predicated region
    $region30: #{temporal_conv_net.3} parent=1 // pred_check
      _
    $region31: #{temporal_conv_net.3} parent=1 // pred_check_branch
      %302 = sbr.rel (0) target = $region33
    $region32: #{temporal_conv_net.3} parent=1 // pred_region
      %303 = dma.done [#allocation3], 256
    $region33: #{temporal_conv_net.3} parent=1 // pred_fallthru
      _
    %304 = vsyncpa [#allocation3], 1

</llo_original>
